<compile_context>
chip_gen: v7x
topology: tpu7x:2x2x1
jax: 0.10.0
libtpu: 0.0.40
codegen_flags: <defaults>
</compile_context>

<pallas_src>
import jax
import jax.numpy as jnp
from jax.experimental import pallas as pl
from jax.experimental.pallas import tpu as pltpu


def _round_up(x, m):
    return (x + m - 1) // m * m


def _vmem_limit_bytes():
    """Generation-aware scoped-VMEM limit: 3/4 of physical capacity.

    v7x (64 MiB physical) -> 48 MiB; v5e/v6e (128 MiB) -> 96 MiB. Falls back
    to the v7x-sized number when the query is unavailable (e.g. interpret
    mode), which is safe on every generation.
    """
    try:
        cap = int(pltpu.get_tpu_info().vmem_capacity_bytes)
    except Exception:
        cap = 64 << 20
    return (3 * cap) // 4


def _pick_tiles(B, T, D, itemsize, vmem_limit):
    """Choose (tb, tt): batch tile and sequence tile.

    VMEM accounting uses *padded* dims (second-minor -> 8 sublanes, minor ->
    128 lanes): with D=32 the true footprint of an input tile is 4x its raw
    bytes. The double-buffered input tiles get ~half of the scoped limit; the
    remainder covers the resident output block, the f32 m/l/acc scratch and
    headroom.
    """
    d_pad = _round_up(D, 128)
    tile_budget = max(vmem_limit // 4, 1 << 20)

    # Preferred: whole sequence per step (single softmax pass over T).
    per_row = _round_up(T, 8) * d_pad * itemsize
    tb = tile_budget // per_row
    if tb >= min(B, 8):
        if tb >= B:
            tb = B
            # v7x has 2 TensorCores: keep >=2 steps on the 'parallel' batch
            # axis whenever the batch splits into >=8-row halves.
            if B >= 16:
                tb = _round_up(-(-B // 2), 8)
        else:
            tb = max(8, (tb // 8) * 8)
        return int(tb), int(T)

    # Long-sequence fallback: tile T as well; the kernel runs an online
    # softmax over the T grid axis, still reading x from HBM exactly once.
    tb = min(B, 8)
    tt = (tile_budget // (tb * d_pad * itemsize)) // 8 * 8
    tt = int(max(8, tt))
    if tt >= T:
        tt = T
    return int(tb), int(tt)


def _make_kernel(t_total, tt, needs_mask):
    def kernel(x_ref, w_ref, o_ref, m_sc, l_sc, acc_sc):
        # x_ref: (tb, tt, D) input tile (native dtype; upcast per expression)
        # w_ref: (1, D)      Linear weight (PyTorch layout (out=1, in=D))
        # o_ref: (tb, D)     output tile (resident across the T grid axis)
        # m_sc/l_sc: (tb, 1, 1) f32 running max / denominator
        # acc_sc:    (tb, D)    f32 running weighted sum
        j = pl.program_id(1)

        @pl.when(j == 0)
        def _init():
            m_sc[...] = jnp.full_like(m_sc, -jnp.inf)
            l_sc[...] = jnp.zeros_like(l_sc)
            acc_sc[...] = jnp.zeros_like(acc_sc)

        w = w_ref[...].astype(jnp.float32).reshape(1, 1, -1)      # (1, 1, D)

        # Pass 1: scores for this T tile. Keepdims 3-D form: no (tb, tt) lane
        # relayout and no broadcast-back relayout for p below.
        # TODO(synk): if the XLU D-reduce shows on the critical path, offload
        # it to the idle MXU as a (tb*tt, D) @ (D, 128) matmul, or fold
        # k = 128 // D rows per lane row for lane-dense tiles when D < 128.
        scores = jnp.sum(x_ref[...].astype(jnp.float32) * w,
                         axis=-1, keepdims=True)                  # (tb, tt, 1)

        if needs_mask:
            t_idx = j * tt + jax.lax.broadcasted_iota(jnp.int32, scores.shape, 1)
            valid = t_idx < t_total
            scores = jnp.where(valid, scores, -jnp.inf)

        # Online softmax update (exact arithmetic; no approx reciprocal).
        m_prev = m_sc[...]
        m_new = jnp.maximum(m_prev, jnp.max(scores, axis=1, keepdims=True))
        alpha = jnp.exp(m_prev - m_new)                           # (tb, 1, 1)
        p = jnp.exp(scores - m_new)                               # (tb, tt, 1)
        l_sc[...] = alpha * l_sc[...] + jnp.sum(p, axis=1, keepdims=True)

        # Pass 2: weighted sum over this T tile. x_ref is re-read from VMEM
        # (nearly free: 3 vld slots/cycle) so no full f32 tile stays live.
        xp = x_ref[...].astype(jnp.float32) * p                   # (tb, tt, D)
        if needs_mask:
            xp = jnp.where(valid, xp, 0.0)                        # guard pad garbage
        acc_sc[...] = alpha[:, 0, :] * acc_sc[...] + jnp.sum(xp, axis=1)
        m_sc[...] = m_new

        @pl.when(j == pl.num_programs(1) - 1)
        def _finalize():
            # Padded batch rows of the last block (B % tb != 0) divide by l=0
            # and produce inf/nan; they are discarded on writeback and TPUs do
            # not trap, so this is benign — do not "fix" with a branch.
            o_ref[...] = (acc_sc[...] / l_sc[...][:, 0, :]).astype(o_ref.dtype)

    return kernel


def location_attention(inputs, weight, bias=None):
    """inputs: (B, T, D); weight: (1, D); bias: (1,) or None -> (B, D).

    The Linear bias is accepted for API parity but unused: softmax over T is
    invariant to a per-row constant, so the bias has exactly zero effect on
    the module output.
    """
    del bias
    B, T, D = inputs.shape
    vmem_limit = _vmem_limit_bytes()
    tb, tt = _pick_tiles(B, T, D, inputs.dtype.itemsize, vmem_limit)
    needs_mask = (T % tt) != 0
    grid = (pl.cdiv(B, tb), pl.cdiv(T, tt))

    return pl.pallas_call(
        _make_kernel(T, tt, needs_mask),
        out_shape=jax.ShapeDtypeStruct((B, D), inputs.dtype),
        grid=grid,
        in_specs=[
            pl.BlockSpec((tb, tt, D), lambda i, j: (i, j, 0)),  # inputs, native dtype
            pl.BlockSpec((1, D), lambda i, j: (0, 0)),          # weight (tiny, VMEM)
        ],
        out_specs=pl.BlockSpec((tb, D), lambda i, j: (i, 0)),   # lane-dense (B, D)
        scratch_shapes=[
            pltpu.VMEM((tb, 1, 1), jnp.float32),   # running max   m
            pltpu.VMEM((tb, 1, 1), jnp.float32),   # running denom l
            pltpu.VMEM((tb, D), jnp.float32),      # running weighted sum
        ],
        compiler_params=pltpu.CompilerParams(
            dimension_semantics=("parallel", "arbitrary"),
            vmem_limit_bytes=int(vmem_limit),
        ),
    )(inputs, weight)


def _reference(inputs, weight, bias):
    # Pure-JAX reference mirroring the PyTorch forward (bias included).
    scores = jnp.einsum("btd,od->bto", inputs, weight) + bias   # (B, T, 1)
    attn_w = jax.nn.softmax(scores, axis=1)                     # (B, T, 1)
    return jnp.einsum("btd,bto->bdo", inputs, attn_w)[..., 0]   # (B, D)


if __name__ == "__main__":
    B, T, D = 2, 8, 32  # batch, seq, n_input

    key = jax.random.PRNGKey(0)
    k_x, k_w, k_b = jax.random.split(key, 3)

    inputs = jax.random.normal(k_x, (B, T, D), dtype=jnp.float32)
    # Deterministic Linear(n_input, 1) parameters (PyTorch layout: (1, D), (1,))
    weight = jax.random.normal(k_w, (1, D), dtype=jnp.float32) * 0.1
    bias = jax.random.normal(k_b, (1,), dtype=jnp.float32) * 0.1

    out = jax.block_until_ready(location_attention(inputs, weight, bias))
    ref = _reference(inputs, weight, bias)

    assert out.shape == (B, D), out.shape
    assert jnp.allclose(out, ref, atol=1e-4, rtol=1e-4), "mismatch vs reference"

    print("KERNEL_OK")
</pallas_src>

<mosaic_0001>
module attributes {stable_mosaic.version = 11 : i64} {
  func.func @kernel(%arg0: i32, %arg1: i32, %arg2: memref<2x8x32xf32, #tpu.memory_space<vmem>>, %arg3: memref<1x32xf32, #tpu.memory_space<vmem>>, %arg4: memref<2x32xf32, #tpu.memory_space<vmem>>, %arg5: memref<2x1x1xf32, #tpu.memory_space<vmem>>, %arg6: memref<2x1x1xf32, #tpu.memory_space<vmem>>, %arg7: memref<2x32xf32, #tpu.memory_space<vmem>>) attributes {dimension_semantics = [#tpu.dimension_semantics<parallel>, #tpu.dimension_semantics<arbitrary>], iteration_bounds = array<i64: 1, 1>, scalar_prefetch = 0 : i64, scratch_operands = 3 : i64, tpu.core_type = #tpu.core_type<tc>, window_params = [{transform_indices = @transform_0, window_bounds = array<i64: 2, 8, 32>}, {pipeline_mode = #tpu.pipeline_mode<synchronous>, transform_indices = @transform_1, window_bounds = array<i64: 1, 32>}, {transform_indices = @transform_2, window_bounds = array<i64: 2, 32>}]} {
    %c0_i32 = arith.constant 0 : i32
    %0 = arith.cmpi eq, %arg1, %c0_i32 : i32
    %1 = arith.extui %0 : i1 to i32
    %c0_i32_0 = arith.constant 0 : i32
    %2 = arith.cmpi ne, %1, %c0_i32_0 : i32
    scf.if %2 {
      %cst_29 = arith.constant 0xFF800000 : f32
      %39 = vector.broadcast %cst_29 : f32 to vector<2x1x1xf32>
      %c0_30 = arith.constant 0 : index
      %c0_31 = arith.constant 0 : index
      %c0_32 = arith.constant 0 : index
      %40 = vector.load %arg5[%c0_30, %c0_31, %c0_32] : memref<2x1x1xf32, #tpu.memory_space<vmem>>, vector<2x1x1xf32>
      tpu.vector_store %arg5[%c0_30, %c0_31, %c0_32], %39 {strides = array<i32>} : memref<2x1x1xf32, #tpu.memory_space<vmem>>, vector<2x1x1xf32>,
      %cst_33 = arith.constant 0.000000e+00 : f32
      %41 = vector.broadcast %cst_33 : f32 to vector<2x1x1xf32>
      %c0_34 = arith.constant 0 : index
      %c0_35 = arith.constant 0 : index
      %c0_36 = arith.constant 0 : index
      %42 = vector.load %arg6[%c0_34, %c0_35, %c0_36] : memref<2x1x1xf32, #tpu.memory_space<vmem>>, vector<2x1x1xf32>
      tpu.vector_store %arg6[%c0_34, %c0_35, %c0_36], %41 {strides = array<i32>} : memref<2x1x1xf32, #tpu.memory_space<vmem>>, vector<2x1x1xf32>,
      %cst_37 = arith.constant 0.000000e+00 : f32
      %43 = vector.broadcast %cst_37 : f32 to vector<2x32xf32>
      %c0_38 = arith.constant 0 : index
      %c0_39 = arith.constant 0 : index
      %44 = vector.load %arg7[%c0_38, %c0_39] : memref<2x32xf32, #tpu.memory_space<vmem>>, vector<2x32xf32>
      tpu.vector_store %arg7[%c0_38, %c0_39], %43 {strides = array<i32>} : memref<2x32xf32, #tpu.memory_space<vmem>>, vector<2x32xf32>,
    } else {
    }
    %c0 = arith.constant 0 : index
    %c0_1 = arith.constant 0 : index
    %3 = vector.load %arg3[%c0, %c0_1] : memref<1x32xf32, #tpu.memory_space<vmem>>, vector<1x32xf32>
    %4 = vector.shape_cast %3 : vector<1x32xf32> to vector<1x1x32xf32>
    %c0_2 = arith.constant 0 : index
    %c0_3 = arith.constant 0 : index
    %c0_4 = arith.constant 0 : index
    %5 = vector.load %arg2[%c0_2, %c0_3, %c0_4] : memref<2x8x32xf32, #tpu.memory_space<vmem>>, vector<2x8x32xf32>
    %6 = vector.broadcast %4 : vector<1x1x32xf32> to vector<2x8x32xf32>
    %7 = arith.mulf %5, %6 : vector<2x8x32xf32>
    %cst = arith.constant dense<0.000000e+00> : vector<2x8xf32>
    %8 = vector.multi_reduction <add>, %7, %cst [2] : vector<2x8x32xf32> to vector<2x8xf32>
    %9 = vector.shape_cast %8 : vector<2x8xf32> to vector<2x8x1xf32>
    %c0_5 = arith.constant 0 : index
    %c0_6 = arith.constant 0 : index
    %c0_7 = arith.constant 0 : index
    %10 = vector.load %arg5[%c0_5, %c0_6, %c0_7] : memref<2x1x1xf32, #tpu.memory_space<vmem>>, vector<2x1x1xf32>
    %cst_8 = arith.constant dense<0xFF800000> : vector<2x1xf32>
    %11 = vector.multi_reduction <maximumf>, %9, %cst_8 [1] : vector<2x8x1xf32> to vector<2x1xf32>
    %12 = vector.shape_cast %11 : vector<2x1xf32> to vector<2x1x1xf32>
    %13 = arith.maximumf %10, %12 : vector<2x1x1xf32>
    %14 = arith.subf %10, %13 : vector<2x1x1xf32>
    %15 = math.exp %14 : vector<2x1x1xf32>
    %16 = vector.broadcast %13 : vector<2x1x1xf32> to vector<2x8x1xf32>
    %17 = arith.subf %9, %16 : vector<2x8x1xf32>
    %18 = math.exp %17 : vector<2x8x1xf32>
    %c0_9 = arith.constant 0 : index
    %c0_10 = arith.constant 0 : index
    %c0_11 = arith.constant 0 : index
    %19 = vector.load %arg6[%c0_9, %c0_10, %c0_11] : memref<2x1x1xf32, #tpu.memory_space<vmem>>, vector<2x1x1xf32>
    %20 = arith.mulf %15, %19 : vector<2x1x1xf32>
    %cst_12 = arith.constant dense<0.000000e+00> : vector<2x1xf32>
    %21 = vector.multi_reduction <add>, %18, %cst_12 [1] : vector<2x8x1xf32> to vector<2x1xf32>
    %22 = vector.shape_cast %21 : vector<2x1xf32> to vector<2x1x1xf32>
    %23 = arith.addf %20, %22 : vector<2x1x1xf32>
    %c0_13 = arith.constant 0 : index
    %c0_14 = arith.constant 0 : index
    %c0_15 = arith.constant 0 : index
    %24 = vector.load %arg6[%c0_13, %c0_14, %c0_15] : memref<2x1x1xf32, #tpu.memory_space<vmem>>, vector<2x1x1xf32>
    tpu.vector_store %arg6[%c0_13, %c0_14, %c0_15], %23 {strides = array<i32>} : memref<2x1x1xf32, #tpu.memory_space<vmem>>, vector<2x1x1xf32>,
    %c0_16 = arith.constant 0 : index
    %c0_17 = arith.constant 0 : index
    %c0_18 = arith.constant 0 : index
    %25 = vector.load %arg2[%c0_16, %c0_17, %c0_18] : memref<2x8x32xf32, #tpu.memory_space<vmem>>, vector<2x8x32xf32>
    %26 = vector.broadcast %18 : vector<2x8x1xf32> to vector<2x8x32xf32>
    %27 = arith.mulf %25, %26 : vector<2x8x32xf32>
    %28 = vector.shape_cast %15 : vector<2x1x1xf32> to vector<2x1xf32>
    %c0_19 = arith.constant 0 : index
    %c0_20 = arith.constant 0 : index
    %29 = vector.load %arg7[%c0_19, %c0_20] : memref<2x32xf32, #tpu.memory_space<vmem>>, vector<2x32xf32>
    %30 = vector.broadcast %28 : vector<2x1xf32> to vector<2x32xf32>
    %31 = arith.mulf %30, %29 : vector<2x32xf32>
    %cst_21 = arith.constant dense<0.000000e+00> : vector<2x32xf32>
    %32 = vector.multi_reduction <add>, %27, %cst_21 [1] : vector<2x8x32xf32> to vector<2x32xf32>
    %33 = arith.addf %31, %32 : vector<2x32xf32>
    %c0_22 = arith.constant 0 : index
    %c0_23 = arith.constant 0 : index
    %34 = vector.load %arg7[%c0_22, %c0_23] : memref<2x32xf32, #tpu.memory_space<vmem>>, vector<2x32xf32>
    tpu.vector_store %arg7[%c0_22, %c0_23], %33 {strides = array<i32>} : memref<2x32xf32, #tpu.memory_space<vmem>>, vector<2x32xf32>,
    %c0_24 = arith.constant 0 : index
    %c0_25 = arith.constant 0 : index
    %c0_26 = arith.constant 0 : index
    %35 = vector.load %arg5[%c0_24, %c0_25, %c0_26] : memref<2x1x1xf32, #tpu.memory_space<vmem>>, vector<2x1x1xf32>
    tpu.vector_store %arg5[%c0_24, %c0_25, %c0_26], %13 {strides = array<i32>} : memref<2x1x1xf32, #tpu.memory_space<vmem>>, vector<2x1x1xf32>,
    %c0_i32_27 = arith.constant 0 : i32
    %36 = arith.cmpi eq, %arg1, %c0_i32_27 : i32
    %37 = arith.extui %36 : i1 to i32
    %c0_i32_28 = arith.constant 0 : i32
    %38 = arith.cmpi ne, %37, %c0_i32_28 : i32
    scf.if %38 {
      %c0_29 = arith.constant 0 : index
      %c0_30 = arith.constant 0 : index
      %39 = vector.load %arg7[%c0_29, %c0_30] : memref<2x32xf32, #tpu.memory_space<vmem>>, vector<2x32xf32>
      %c0_31 = arith.constant 0 : index
      %c0_32 = arith.constant 0 : index
      %c0_33 = arith.constant 0 : index
      %40 = vector.load %arg6[%c0_31, %c0_32, %c0_33] : memref<2x1x1xf32, #tpu.memory_space<vmem>>, vector<2x1x1xf32>
      %41 = vector.shape_cast %40 : vector<2x1x1xf32> to vector<2x1xf32>
      %42 = vector.broadcast %41 : vector<2x1xf32> to vector<2x32xf32>
      %43 = arith.divf %39, %42 : vector<2x32xf32>
      %c0_34 = arith.constant 0 : index
      %c0_35 = arith.constant 0 : index
      %44 = vector.load %arg4[%c0_34, %c0_35] : memref<2x32xf32, #tpu.memory_space<vmem>>, vector<2x32xf32>
      tpu.vector_store %arg4[%c0_34, %c0_35], %43 {strides = array<i32>} : memref<2x32xf32, #tpu.memory_space<vmem>>, vector<2x32xf32>,
    } else {
    }
    return
  }
  func.func @transform_0(%arg0: i32, %arg1: i32) -> (i32, i32, i32) {
    %c0_i32 = arith.constant 0 : i32
    %c0_i32_0 = arith.constant 0 : i32
    return %arg0, %arg1, %c0_i32 : i32, i32, i32
  }
  func.func @transform_1(%arg0: i32, %arg1: i32) -> (i32, i32) {
    %c0_i32 = arith.constant 0 : i32
    %c0_i32_0 = arith.constant 0 : i32
    %c0_i32_1 = arith.constant 0 : i32
    return %c0_i32, %c0_i32_0 : i32, i32
  }
  func.func @transform_2(%arg0: i32, %arg1: i32) -> (i32, i32) {
    %c0_i32 = arith.constant 0 : i32
    %c0_i32_0 = arith.constant 0 : i32
    return %arg0, %c0_i32 : i32, i32
  }
}

</mosaic_0001>

<llo_original>
// kernel: tpu_custom_call.1
$region0: #{tpu_custom_call.1}
  #allocation0 [shape = 'u32[]', space=smem, size = 0x4, offset = 0x4, fixed_abs, tag = 'smem constant byte address 0x4 - core index']
  #allocation1 [shape = 'u32[144,128]{1,0:T(1,128)}', space=vmem, size = 0x12000, scoped, tag = 'internal scratch']
  #allocation2 [shape = 'f32[2,1,1]{2,1,0:T(1,128)}', space=vmem, size = 0x400, scoped, tag = 'scratch operand']
  #allocation3 [shape = 'f32[2,1,1]{2,1,0:T(1,128)}', space=vmem, size = 0x400, scoped, tag = 'scratch operand']
  #allocation4 [shape = 'f32[2,32]{1,0:T(2,128)}', space=vmem, size = 0x400, scoped, tag = 'scratch operand']
  %s0 = inlined_call_operand.hbm [shape: f32[2,8,32], index: 0, kind: input, shape index: {}]
  %s1 = inlined_call_operand.vmem [shape: f32[1,32], index: 1, kind: input, shape index: {}]
  %s2 = inlined_call_operand.hbm [shape: f32[2,32], index: 2, kind: output, shape index: {}]
  %s3 = sld [smem:[#allocation0]]
  $region30: #{tpu_custom_call.1} parent=0
    _
  %s5 = ssub.s32 1, %s3
  %s6 = scalar_select 0, %s5, %s3
  $region1: #{tpu_custom_call.1} parent=0
    #allocation5 [shape = 'u8[8192]{0}', space=vmem, size = 0x2000, scoped, tag = 'input window, operand 0, single buffered']
    #allocation6 [shape = 's32[1]{0}', space=sflag, size = 0x4, scoped, tag = 'scoped memory for tpu_custom_call.1']
    #allocation7 [shape = 's32[1]{0}', space=sflag, size = 0x4, scoped, tag = 'scoped memory for tpu_custom_call.1']
    #allocation8 [shape = 'u8[1024]{0}', space=vmem, size = 0x400, scoped, tag = 'output window, operand 0, single buffered']
    %7 = vsyncpa [#allocation6], 0
    %8 = vsyncpa [#allocation7], 0
    // Predicated region
    $region2: #{tpu_custom_call.1} parent=1 // pred_check
      _
    $region3: #{tpu_custom_call.1} parent=1 // pred_check_branch
      %10 = sbr.rel (0) target = $region5
    $region4: #{tpu_custom_call.1} parent=1 // pred_region
      %s12 = ssub.s32 256, 256
      %13 = vsyncadd [#allocation6], %s12
      %s14 = sshll.u32 [#allocation5], 4
      %s15 = int_to_ptr.vmem [resolvable:$true] %s14
      %20 = dma.hbm_to_vmem [thread:$0]  %s0, 256, %s15, [#allocation6], 128, 128, 8
    $region5: #{tpu_custom_call.1} parent=1 // pred_fallthru
      _
    // Predicated region
    $region6: #{tpu_custom_call.1} parent=1 // pred_check
      _
    $region7: #{tpu_custom_call.1} parent=1 // pred_check_branch
      %22 = sbr.rel (0) target = $region9
    $region8: #{tpu_custom_call.1} parent=1 // pred_region
      _
    $region9: #{tpu_custom_call.1} parent=1 // pred_fallthru
      _
    // Predicated region
    $region10: #{tpu_custom_call.1} parent=1 // pred_check
      _
    $region11: #{tpu_custom_call.1} parent=1 // pred_check_branch
      %24 = sbr.rel (0) target = $region13
    $region12: #{tpu_custom_call.1} parent=1 // pred_region
      %25 = dma.done [#allocation6], 256
    $region13: #{tpu_custom_call.1} parent=1 // pred_fallthru
      _
    %p26 = scmp.eq.s32.totalorder 0, 0
    // Predicated region
    $region14: #{tpu_custom_call.1} parent=1 // pred_check
      %p27 = pneg %p26
    $region15: #{tpu_custom_call.1} parent=1 // pred_check_branch
      %29 = sbr.rel (%p27) target = $region17
    $region16: #{tpu_custom_call.1} parent=1 // pred_region
      %vm30 = vcmask 0
      %31 = vst.msk [vmem:[#allocation2] sm:$0x1] %vm30, -inf
      %32 = vst.msk [vmem:[#allocation2 + $0x1] sm:$0x1] %vm30, -inf
      %33 = vst.msk [vmem:[#allocation3] sm:$0x1] %vm30, 0.0
      %34 = vst.msk [vmem:[#allocation3 + $0x1] sm:$0x1] %vm30, 0.0
      %vm35 = vcmask 254976
      %36 = vst.msk [vmem:[#allocation4] sm:$0x3] %vm35, 0.0
    $region17: #{tpu_custom_call.1} parent=1 // pred_fallthru
      _
    %v37 = vld [vmem:[%s1] sm:$0x1]
    %v38 = vld [vmem:[#allocation5] sm:$0xff]
    %v39 = vld [vmem:[#allocation5 + $0x8] sm:$0xff]
    %v41 = vlaneseq
    %v42 = vshrl.u32 %v41, 7
    %v43 = vsub.s32 0, %v42
    %v44 = vrot.slane %v37, %v43
    %v46 = vmul.f32 %v38, %v44
    %v47 = vmul.f32 %v39, %v44
    %vm48 = vcmask 261120
    %v49 = vsel %vm48, %v46, 0.0
    %50 = vadd.xlane.f32.xlu0 %v49
    %v51 = vpop.xlane.xlu0 %50
    %v52 = vsel %vm48, %v47, 0.0
    %53 = vadd.xlane.f32.xlu0 %v52
    %v54 = vpop.xlane.xlu0 %53
    %v55 = vld [vmem:[#allocation2] sm:$0x1]
    %v56 = vld [vmem:[#allocation2 + $0x1] sm:$0x1]
    %v57 = vrot.slane %v51, 4
    %v58 = vmax.f32 %v51, %v57
    %v59 = vrot.slane %v58, 2
    %v60 = vmax.f32 %v58, %v59
    %v61 = vrot.slane %v60, 1
    %v62 = vmax.f32 %v60, %v61
    %v63 = vrot.slane %v54, 4
    %v64 = vmax.f32 %v54, %v63
    %v65 = vrot.slane %v64, 2
    %v66 = vmax.f32 %v64, %v65
    %v67 = vrot.slane %v66, 1
    %v68 = vmax.f32 %v66, %v67
    %v69 = vmax.f32 %v55, %v62
    %v70 = vmax.f32 %v56, %v68
    %v71 = vsub.f32 %v55, %v69
    %v72 = vsub.f32 %v56, %v70
    %v73 = vmul.f32 %v71, 1.442695
    %v74 = vpow.pop %v73
    %v75 = vmul.f32 %v72, 1.442695
    %v76 = vpow.pop %v75
    %v79 = vlaneseq
    %v80 = vshrl.u32 %v79, 7
    %v81 = vsub.s32 0, %v80
    %v82 = vrot.slane %v69, %v81
    %v83 = vlaneseq
    %v84 = vshrl.u32 %v83, 7
    %v85 = vsub.s32 0, %v84
    %v86 = vrot.slane %v70, %v85
    %v89 = vsub.f32 %v51, %v82
    %v90 = vsub.f32 %v54, %v86
    %v91 = vmul.f32 %v89, 1.442695
    %v92 = vpow.pop %v91
    %v93 = vmul.f32 %v90, 1.442695
    %v94 = vpow.pop %v93
    %v95 = vld [vmem:[#allocation3] sm:$0x1]
    %v96 = vld [vmem:[#allocation3 + $0x1] sm:$0x1]
    %v97 = vmul.f32 %v74, %v95
    %v98 = vmul.f32 %v76, %v96
    %vm99 = vcmask 7168
    %v100 = vsel %vm99, %v92, 0.0
    %v101 = vrot.slane %v100, 4
    %v102 = vadd.f32 %v100, %v101
    %v103 = vrot.slane %v102, 2
    %v104 = vadd.f32 %v102, %v103
    %v105 = vrot.slane %v104, 1
    %v106 = vadd.f32 %v104, %v105
    %v107 = vsel %vm99, %v94, 0.0
    %v108 = vrot.slane %v107, 4
    %v109 = vadd.f32 %v107, %v108
    %v110 = vrot.slane %v109, 2
    %v111 = vadd.f32 %v109, %v110
    %v112 = vrot.slane %v111, 1
    %v113 = vadd.f32 %v111, %v112
    %v114 = vadd.f32 %v97, %v106
    %v115 = vadd.f32 %v98, %v113
    %vm116 = vcmask 0
    %117 = vst.msk [vmem:[#allocation3] sm:$0x1] %vm116, %v114
    %118 = vst.msk [vmem:[#allocation3 + $0x1] sm:$0x1] %vm116, %v115
    %v119 = vld [vmem:[#allocation5] sm:$0xff]
    %v120 = vld [vmem:[#allocation5 + $0x8] sm:$0xff]
    %122 = vset.pattern.permute.xlu0 0
    %123 = vperm.xlu0 %122, %v92
    %v124 = vpop.permute.xlu0 %123
    %127 = vset.pattern.permute.xlu0 0
    %128 = vperm.xlu0 %127, %v94
    %v129 = vpop.permute.xlu0 %128
    %v131 = vmul.f32 %v119, %v124
    %v132 = vmul.f32 %v120, %v129
    %v133 = vld [vmem:[#allocation4] sm:$0x3]
    %135 = vset.pattern.permute.xlu0 0
    %136 = vperm.xlu0 %135, %v74
    %v137 = vpop.permute.xlu0 %136
    %v139 = vlaneseq
    %v140 = vshrl.u32 %v139, 7
    %v141 = vsub.s32 0, %v140
    %v142 = vrot.slane %v137, %v141
    %144 = vset.pattern.permute.xlu0 0
    %145 = vperm.xlu0 %144, %v76
    %v146 = vpop.permute.xlu0 %145
    %v148 = vlaneseq
    %v149 = vshrl.u32 %v148, 7
    %v150 = vsub.s32 0, %v149
    %v151 = vrot.slane %v146, %v150
    %v154 = vunpack.c.l.s4 1966171168
    %v155 = vunpack.c.0.s8 %v154
    %v156 = vlaneseq
    %v157 = vshrl.u32 %v156, 7
    %v158 = vsub.s32 %v155, %v157
    %v159 = vrot.slane %v133, %v158
    %v160 = vcombine.high %v159, %v159
    %v162 = vunpack.c.l.s4 1966171168
    %v163 = vunpack.c.0.s8 %v162
    %v164 = vlaneseq
    %v165 = vshrl.u32 %v164, 7
    %v166 = vsub.s32 %v163, %v165
    %v167 = vrot.slane %v159, %v166
    %v169 = vunpack.c.l.s4 1966171168
    %v170 = vunpack.c.0.s8 %v169
    %v171 = vlaneseq
    %v172 = vshrl.u32 %v171, 7
    %v173 = vsub.s32 %v170, %v172
    %v174 = vrot.slane %v160, %v173
    %v177 = vmul.f32 %v142, %v167
    %v178 = vmul.f32 %v151, %v174
    %v179 = vsel %vm48, %v131, 0.0
    %v180 = vrot.slane %v179, 4
    %v181 = vadd.f32 %v179, %v180
    %v182 = vrot.slane %v181, 2
    %v183 = vadd.f32 %v181, %v182
    %v184 = vrot.slane %v183, 1
    %v185 = vadd.f32 %v183, %v184
    %v186 = vsel %vm48, %v132, 0.0
    %v187 = vrot.slane %v186, 4
    %v188 = vadd.f32 %v186, %v187
    %v189 = vrot.slane %v188, 2
    %v190 = vadd.f32 %v188, %v189
    %v191 = vrot.slane %v190, 1
    %v192 = vadd.f32 %v190, %v191
    %v196 = vunpack.c.l.s4 1966171168
    %v197 = vunpack.c.0.s8 %v196
    %v198 = vlaneseq
    %v199 = vshrl.u32 %v198, 7
    %v200 = vsub.s32 %v197, %v199
    %v201 = vrot.slane %v185, %v200
    %v203 = vunpack.c.l.s4 1966171168
    %v204 = vunpack.c.0.s8 %v203
    %v205 = vlaneseq
    %v206 = vshrl.u32 %v205, 7
    %v207 = vsub.s32 %v204, %v206
    %v208 = vrot.slane %v201, %v207
    %v210 = vunpack.c.l.s4 1966171168
    %v211 = vunpack.c.0.s8 %v210
    %v212 = vlaneseq
    %v213 = vshrl.u32 %v212, 7
    %v214 = vsub.s32 %v211, %v213
    %v215 = vrot.slane %v192, %v214
    %v217 = vunpack.c.l.s4 1966171168
    %v218 = vunpack.c.0.s8 %v217
    %v219 = vlaneseq
    %v220 = vshrl.u32 %v219, 7
    %v221 = vsub.s32 %v218, %v220
    %v222 = vrot.slane %v215, %v221
    %v225 = vadd.f32 %v177, %v208
    %v226 = vadd.f32 %v178, %v222
    %v229 = vcombine.low %v225, %v226
    %v231 = vunpack.c.l.s4 1966171168
    %v232 = vunpack.c.0.s8 %v231
    %v233 = vlaneseq
    %v234 = vshrl.u32 %v233, 7
    %v235 = vsub.s32 %v232, %v234
    %v236 = vrot.slane %v229, %v235
    %v238 = vunpack.c.l.s4 1966171168
    %v239 = vunpack.c.0.s8 %v238
    %v240 = vlaneseq
    %v241 = vshrl.u32 %v240, 7
    %v242 = vsub.s32 %v239, %v241
    %v243 = vrot.slane %v236, %v242
    %vm245 = vcmask 254976
    %246 = vst.msk [vmem:[#allocation4] sm:$0x3] %vm245, %v243
    %247 = vst.msk [vmem:[#allocation2] sm:$0x1] %vm116, %v69
    %248 = vst.msk [vmem:[#allocation2 + $0x1] sm:$0x1] %vm116, %v70
    // Predicated region
    $region18: #{tpu_custom_call.1} parent=1 // pred_check
      %p249 = pneg %p26
    $region19: #{tpu_custom_call.1} parent=1 // pred_check_branch
      %251 = sbr.rel (%p249) target = $region21
    $region20: #{tpu_custom_call.1} parent=1 // pred_region
      %v252 = vld [vmem:[#allocation4] sm:$0x3]
      %v253 = vld [vmem:[#allocation3] sm:$0x1]
      %v254 = vld [vmem:[#allocation3 + $0x1] sm:$0x1]
      %256 = vset.pattern.permute.xlu0 0
      %257 = vperm.xlu0 %256, %v253
      %v258 = vpop.permute.xlu0 %257
      %v260 = vlaneseq
      %v261 = vshrl.u32 %v260, 7
      %v262 = vsub.s32 0, %v261
      %v263 = vrot.slane %v258, %v262
      %265 = vset.pattern.permute.xlu0 0
      %266 = vperm.xlu0 %265, %v254
      %v267 = vpop.permute.xlu0 %266
      %v269 = vlaneseq
      %v270 = vshrl.u32 %v269, 7
      %v271 = vsub.s32 0, %v270
      %v272 = vrot.slane %v267, %v271
      %v275 = vcombine.low %v263, %v272
      %v277 = vunpack.c.l.s4 1966171168
      %v278 = vunpack.c.0.s8 %v277
      %v279 = vlaneseq
      %v280 = vshrl.u32 %v279, 7
      %v281 = vsub.s32 %v278, %v280
      %v282 = vrot.slane %v275, %v281
      %v284 = vunpack.c.l.s4 1966171168
      %v285 = vunpack.c.0.s8 %v284
      %v286 = vlaneseq
      %v287 = vshrl.u32 %v286, 7
      %v288 = vsub.s32 %v285, %v287
      %v289 = vrot.slane %v282, %v288
      %v291 = vrcp.pop %v289
      %v292 = vmul.f32 %v252, %v291
      %293 = vst.msk [vmem:[#allocation8] sm:$0x3] %vm245, %v292
    $region21: #{tpu_custom_call.1} parent=1 // pred_fallthru
      _
    // Predicated region
    $region22: #{tpu_custom_call.1} parent=1 // pred_check
      _
    $region23: #{tpu_custom_call.1} parent=1 // pred_check_branch
      %295 = sbr.rel (0) target = $region25
    $region24: #{tpu_custom_call.1} parent=1 // pred_region
      %s297 = ssub.s32 32, 32
      %298 = vsyncadd [#allocation7], %s297
      %s300 = sshll.u32 [#allocation8], 4
      %s301 = int_to_ptr.vmem [resolvable:$true] %s300
      %303 = dma.vmem_to_hbm [thread:$0]  %s301, 32, %s2, [#allocation7]
    $region25: #{tpu_custom_call.1} parent=1 // pred_fallthru
      _
    // Predicated region
    $region26: #{tpu_custom_call.1} parent=1 // pred_check
      _
    $region27: #{tpu_custom_call.1} parent=1 // pred_check_branch
      %305 = sbr.rel (0) target = $region29
    $region28: #{tpu_custom_call.1} parent=1 // pred_region
      %306 = dma.done [#allocation7], 32
    $region29: #{tpu_custom_call.1} parent=1 // pred_fallthru
      _
    %307 = vsyncpa [#allocation6], 1
    %308 = vsyncpa [#allocation7], 1

</llo_original>
